<compile_context>
chip_gen: v7x
topology: tpu7x:2x2x1
jax: 0.10.0
libtpu: 0.0.40
codegen_flags: <defaults>
</compile_context>

<pallas_src>
import functools

import jax
import jax.numpy as jnp
from jax.experimental import pallas as pl
from jax.experimental.pallas import tpu as pltpu


def _round_up(a, m):
    return (a + m - 1) // m * m


def _partial_triplet_kernel(xm_row_ref, xmT_col_ref, meta_row_ref, meta_col_ref,
                            out_ref, dap_ref, dan_ref, *, margin):
    # xm_row_ref:   (TR, K_pad) bf16  flag-masked features, this row tile of "other" samples
    # xmT_col_ref:  (K_pad, TM) bf16  flag-masked features (transposed), this column tile
    # meta_row_ref: (TR, 4)     f32   per-sample [label, valid, start, end] for the row tile
    # meta_col_ref: (4, TM)     f32   per-sample [label, valid, start, end] for the column tile
    # out_ref:      (4, TM)     f32   rows: [dist_ap, dist_an, hinge, correct]
    # dap_ref/dan_ref: (1, TM)  f32   online max/min accumulators (scratch)
    j = pl.program_id(1)
    big = jnp.float32(1e30)

    @pl.when(j == 0)
    def _():
        dap_ref[...] = jnp.full(dap_ref.shape, -big, dap_ref.dtype)
        dan_ref[...] = jnp.full(dan_ref.shape, big, dan_ref.dtype)

    # One deep Gram matmul, canonical (M,K)x(K,N) MXU feed, bf16 in / f32 accumulate.
    gram = jax.lax.dot_general(
        xm_row_ref[...], xmT_col_ref[...], (((1,), (0,)), ((), ())),
        preferred_element_type=jnp.float32)                          # (TR, TM)

    lab_r = meta_row_ref[:, 0:1]
    val_r = meta_row_ref[:, 1:2]
    st_r = meta_row_ref[:, 2:3]
    en_r = meta_row_ref[:, 3:4]
    lab_c = meta_col_ref[0:1, :]
    val_c = meta_col_ref[1:2, :]
    st_c = meta_col_ref[2:3, :]
    en_c = meta_col_ref[3:4, :]

    # num[r,c] = #parts visible in BOTH samples = interval overlap (exact small integer).
    num = jnp.maximum(jnp.minimum(en_r, en_c) - jnp.maximum(st_r, st_c) + 1.0,
                      jnp.float32(0.0))                              # (TR, TM)

    # sum_p clamp(1 - dot_p, 1e-12)*join_flag / num == (num - gram)/num  (aggregate clamp).
    # Pairs sharing no visible part keep num == 0 -> 0 * (1/0), i.e. NaN, like the torch code.
    dist = jnp.maximum((num - gram) * pl.reciprocal(num, approx=True),
                       jnp.float32(1e-12))                           # (TR, TM)

    vv = (val_r > 0.5) & (val_c > 0.5)
    same = (lab_r == lab_c) & vv
    diff = (lab_r != lab_c) & vv

    # Reduce over the "other sample" (sublane) axis -> per-sample results stay lane-dense.
    dap_ref[...] = jnp.maximum(
        dap_ref[...], jnp.max(jnp.where(same, dist, -big), axis=0, keepdims=True))
    dan_ref[...] = jnp.minimum(
        dan_ref[...], jnp.min(jnp.where(diff, dist, big), axis=0, keepdims=True))

    @pl.when(j == pl.num_programs(1) - 1)
    def _():
        d_ap = dap_ref[...]
        d_an = dan_ref[...]
        out_ref[0:1, :] = d_ap
        out_ref[1:2, :] = d_an
        # MarginRankingLoss(margin)(dist_an, dist_ap, y=1) per-sample hinge + correctness.
        out_ref[2:3, :] = jnp.maximum(d_ap - d_an + jnp.float32(margin), 0.0)
        out_ref[3:4, :] = (d_an > d_ap).astype(jnp.float32)


def partial_triplet_loss(inputs, targets, part_labels, margin=0.0):
    """inputs: (n, d, num_parts) float; targets: (n,) int; part_labels: (n, k) int."""
    n, d, p = inputs.shape
    k = d * p

    start_p = part_labels[:, 0].astype(jnp.int32)
    end_p = part_labels[:, -1].astype(jnp.int32)
    part_idx = jnp.arange(p, dtype=jnp.int32)
    flag = ((start_p[:, None] <= part_idx[None, :]) &
            (end_p[:, None] >= part_idx[None, :]))                           # (n, p) bool

    # --- tile sizes ---------------------------------------------------------
    if n <= 128:
        tm = _round_up(n, 8)          # whole (small) batch in one column tile
    elif n <= 256:
        tm = 128
    else:
        tm = 256                      # 256-wide MXU on v6e/v7x
    n_pad = _round_up(n, tm)
    tr = tm                           # row tile (divides n_pad by construction)
    k_pad = _round_up(k, 256 if tm >= 256 else 128)
    nc = n_pad // tm
    nr = n_pad // tr

    # --- operands (built directly in bf16, no f32 temporaries) --------------
    xm = (inputs.astype(jnp.bfloat16) *
          flag.astype(jnp.bfloat16)[:, None, :]).reshape(n, k)               # flag-masked feats
    xm_p = jnp.pad(xm, ((0, n_pad - n), (0, k_pad - k)))                     # (n_pad, k_pad) bf16
    xmT_p = xm_p.T                                                           # (k_pad, n_pad) bf16

    # Per-sample metadata [label, valid, start, end]; interval clipped to [0, p-1] so that the
    # in-kernel overlap count equals sum_p flag_i*flag_j exactly.
    labels = jnp.pad(targets.astype(jnp.float32), (0, n_pad - n), constant_values=-1.0)
    valid = (jnp.arange(n_pad) < n).astype(jnp.float32)
    s_cl = jnp.pad(jnp.maximum(start_p, 0).astype(jnp.float32), (0, n_pad - n),
                   constant_values=0.0)
    e_cl = jnp.pad(jnp.minimum(end_p, p - 1).astype(jnp.float32), (0, n_pad - n),
                   constant_values=-1.0)
    meta_col = jnp.stack([labels, valid, s_cl, e_cl], axis=0)                # (4, n_pad)
    meta_row = meta_col.T                                                    # (n_pad, 4)

    # --- VMEM budget / cost hint --------------------------------------------
    block_bytes = 2 * (tr * k_pad * 2 + k_pad * tm * 2 + tr * 4 * 4 + 2 * 4 * tm * 4)
    interm_bytes = 8 * tr * tm * 4
    scratch_bytes = 2 * 8 * tm * 4
    vmem_limit = int(min(56 * 1024 * 1024,
                         max(32 * 1024 * 1024,
                             block_bytes + interm_bytes + scratch_bytes + 16 * 1024 * 1024)))
    cost = pl.CostEstimate(
        flops=2 * n_pad * n_pad * k_pad,
        transcendentals=n_pad * n_pad,
        bytes_accessed=(nc * n_pad * k_pad * 2 + n_pad * k_pad * 2
                        + 2 * n_pad * 4 * 4 + 4 * n_pad * 4))

    kernel = functools.partial(_partial_triplet_kernel, margin=float(margin))

    out = pl.pallas_call(
        kernel,
        out_shape=jax.ShapeDtypeStruct((4, n_pad), jnp.float32),
        grid_spec=pltpu.PrefetchScalarGridSpec(
            num_scalar_prefetch=0,
            grid=(nc, nr),                                        # (column tiles, row tiles)
            in_specs=[
                pl.BlockSpec((tr, k_pad), lambda i, j: (j, 0)),   # xm, row tile
                pl.BlockSpec((k_pad, tm), lambda i, j: (0, i)),   # xm^T, column tile
                pl.BlockSpec((tr, 4), lambda i, j: (j, 0)),       # metadata, row tile
                pl.BlockSpec((4, tm), lambda i, j: (0, i)),       # metadata, column tile
            ],
            out_specs=pl.BlockSpec((4, tm), lambda i, j: (0, i)),
            scratch_shapes=[pltpu.VMEM((1, tm), jnp.float32),     # dist_ap accumulator
                            pltpu.VMEM((1, tm), jnp.float32)],    # dist_an accumulator
        ),
        compiler_params=pltpu.CompilerParams(
            dimension_semantics=("parallel", "arbitrary"),        # cols shard, rows reduce
            vmem_limit_bytes=vmem_limit,
        ),
        cost_estimate=cost,
    )(xm_p, xmT_p, meta_row, meta_col)

    d_ap = out[0, :n]
    d_an = out[1, :n]
    hinge = out[2, :n]
    correct = out[3, :n]
    return jnp.mean(hinge), jnp.mean(correct), jnp.mean(d_ap), jnp.mean(d_an)


def _reference(inputs, targets, part_labels, margin=0.0):
    """Pure-JAX reference mirroring the PyTorch forward (per-part clamps)."""
    n, d, p = inputs.shape
    start_p = part_labels[:, 0]
    end_p = part_labels[:, -1]
    part_idx = jnp.arange(p, dtype=part_labels.dtype)
    flag = ((start_p[:, None] <= part_idx[None, :]) &
            (end_p[:, None] >= part_idx[None, :])).astype(jnp.float32)
    join_flag = flag[:, None, :] * flag[None, :, :]        # (N, N, P)
    num = join_flag.sum(2)
    x = inputs.astype(jnp.float32)
    dots = jnp.einsum('idp,jdp->ijp', x, x)
    pd = jnp.maximum(jnp.maximum(1.0 - dots, 1e-12), 1e-15)
    dist = (pd * join_flag).sum(2) / num
    same = targets[:, None] == targets[None, :]
    big = jnp.float32(1e30)
    d_ap = jnp.max(jnp.where(same, dist, -big), axis=1)
    d_an = jnp.min(jnp.where(same, big, dist), axis=1)
    loss = jnp.mean(jnp.maximum(d_ap - d_an + margin, 0.0))
    prec = jnp.mean((d_an > d_ap).astype(jnp.float32))
    return loss, prec, jnp.mean(d_ap), jnp.mean(d_an)


if __name__ == "__main__":
    key = jax.random.PRNGKey(0)

    def make_case(k, n, d, num_parts, n_classes, noise=0.05):
        # Clustered (prototype + noise) unit-normalized features so dist_ap << dist_an and the
        # argmax/argmin selections / prec are robust to bf16 + approx-reciprocal rounding.
        k1, k2, k3 = jax.random.split(k, 3)
        protos = jax.random.normal(k1, (n_classes, d, num_parts), dtype=jnp.float32)
        cls = jnp.arange(n, dtype=jnp.int32) % n_classes
        x = protos[cls] + noise * jax.random.normal(k2, (n, d, num_parts), dtype=jnp.float32)
        x = x / jnp.linalg.norm(x, axis=1, keepdims=True)   # cos_dist assumes unit part features
        ends = jax.random.randint(k3, (n,), 1, num_parts, dtype=jnp.int32)
        part_labels = jnp.stack([jnp.zeros((n,), jnp.int32), ends], axis=1)  # all share part 0
        return x, cls, part_labels

    ks = jax.random.split(key, 3)
    cases = [
        (make_case(ks[0], 8, 32, 4, 4), 0.0),       # single tile, exact fit, default margin
        (make_case(ks[1], 12, 32, 4, 6), 1.0),      # padding path, non-zero hinge
        (make_case(ks[2], 160, 32, 4, 40), 0.0),    # 2x2 grid: column tiling + online max/min
    ]

    for (inputs, targets, part_labels), margin in cases:
        out = jax.block_until_ready(
            partial_triplet_loss(inputs, targets, part_labels, margin=margin))

        # Tight check: reference fed the same bf16-rounded operands the MXU sees
        # (tolerance covers the ~2^-12 approx-reciprocal perturbation).
        inputs_bf = inputs.astype(jnp.bfloat16).astype(jnp.float32)
        ref_bf = _reference(inputs_bf, targets, part_labels, margin=margin)
        for a, b in zip(out, ref_bf):
            assert jnp.allclose(a, b, atol=3e-3, rtol=3e-3), (a, b)

        # Loose sanity check against the full-f32 reference (prec excluded out of caution).
        ref = _reference(inputs, targets, part_labels, margin=margin)
        for idx in (0, 2, 3):
            assert jnp.allclose(out[idx], ref[idx], atol=2e-2, rtol=2e-2), (idx, out[idx], ref[idx])

    print("KERNEL_OK")
</pallas_src>

<mosaic_0001>
module attributes {stable_mosaic.version = 11 : i64} {
  func.func @_partial_triplet_kernel(%arg0: i32, %arg1: i32, %arg2: memref<8x128xbf16, #tpu.memory_space<vmem>>, %arg3: memref<128x8xbf16, #tpu.memory_space<vmem>>, %arg4: memref<8x4xf32, #tpu.memory_space<vmem>>, %arg5: memref<4x8xf32, #tpu.memory_space<vmem>>, %arg6: memref<4x8xf32, #tpu.memory_space<vmem>>, %arg7: memref<1x8xf32, #tpu.memory_space<vmem>>, %arg8: memref<1x8xf32, #tpu.memory_space<vmem>>) attributes {dimension_semantics = [#tpu.dimension_semantics<parallel>, #tpu.dimension_semantics<arbitrary>], iteration_bounds = array<i64: 1, 1>, scalar_prefetch = 0 : i64, scratch_operands = 2 : i64, tpu.core_type = #tpu.core_type<tc>, window_params = [{transform_indices = @transform_0, window_bounds = array<i64: 8, 128>}, {transform_indices = @transform_1, window_bounds = array<i64: 128, 8>}, {transform_indices = @transform_2, window_bounds = array<i64: 8, 4>}, {transform_indices = @transform_3, window_bounds = array<i64: 4, 8>}, {transform_indices = @transform_4, window_bounds = array<i64: 4, 8>}]} {
    %c0_i32 = arith.constant 0 : i32
    %0 = arith.cmpi eq, %arg1, %c0_i32 : i32
    %1 = arith.extui %0 : i1 to i32
    %cst = arith.constant 1.000000e+30 : f32
    %c0_i32_0 = arith.constant 0 : i32
    %2 = arith.cmpi ne, %1, %c0_i32_0 : i32
    scf.if %2 {
      %cst_38 = arith.constant 0.000000e+00 : f32
      %63 = arith.subf %cst_38, %cst : f32
      %64 = vector.broadcast %63 : f32 to vector<1x8xf32>
      %c0_39 = arith.constant 0 : index
      %c0_40 = arith.constant 0 : index
      %65 = vector.load %arg7[%c0_39, %c0_40] : memref<1x8xf32, #tpu.memory_space<vmem>>, vector<1x8xf32>
      tpu.vector_store %arg7[%c0_39, %c0_40], %64 {strides = array<i32>} : memref<1x8xf32, #tpu.memory_space<vmem>>, vector<1x8xf32>,
      %66 = vector.broadcast %cst : f32 to vector<1x8xf32>
      %c0_41 = arith.constant 0 : index
      %c0_42 = arith.constant 0 : index
      %67 = vector.load %arg8[%c0_41, %c0_42] : memref<1x8xf32, #tpu.memory_space<vmem>>, vector<1x8xf32>
      tpu.vector_store %arg8[%c0_41, %c0_42], %66 {strides = array<i32>} : memref<1x8xf32, #tpu.memory_space<vmem>>, vector<1x8xf32>,
    } else {
    }
    %c0 = arith.constant 0 : index
    %c0_1 = arith.constant 0 : index
    %3 = vector.load %arg2[%c0, %c0_1] : memref<8x128xbf16, #tpu.memory_space<vmem>>, vector<8x128xbf16>
    %c0_2 = arith.constant 0 : index
    %c0_3 = arith.constant 0 : index
    %4 = vector.load %arg3[%c0_2, %c0_3] : memref<128x8xbf16, #tpu.memory_space<vmem>>, vector<128x8xbf16>
    %cst_4 = arith.constant dense<0.000000e+00> : vector<8x8xf32>
    %5 = tpu.matmul %3, %4, %cst_4 {dimension_numbers = #tpu.dot_dimension_numbers<[1], [0], [0], [1], [0, 0, 1, 1], [], []>} : vector<8x128xbf16>, vector<128x8xbf16>, vector<8x8xf32> -> vector<8x8xf32>
    %c0_5 = arith.constant 0 : index
    %c0_6 = arith.constant 0 : index
    %6 = vector.load %arg4[%c0_5, %c0_6] : memref<8x4xf32, #tpu.memory_space<vmem>>, vector<8x1xf32>
    %c0_7 = arith.constant 0 : index
    %c1 = arith.constant 1 : index
    %7 = vector.load %arg4[%c0_7, %c1] : memref<8x4xf32, #tpu.memory_space<vmem>>, vector<8x1xf32>
    %c0_8 = arith.constant 0 : index
    %c2 = arith.constant 2 : index
    %8 = vector.load %arg4[%c0_8, %c2] : memref<8x4xf32, #tpu.memory_space<vmem>>, vector<8x1xf32>
    %c0_9 = arith.constant 0 : index
    %c3 = arith.constant 3 : index
    %9 = vector.load %arg4[%c0_9, %c3] : memref<8x4xf32, #tpu.memory_space<vmem>>, vector<8x1xf32>
    %c0_10 = arith.constant 0 : index
    %c0_11 = arith.constant 0 : index
    %10 = vector.load %arg5[%c0_10, %c0_11] : memref<4x8xf32, #tpu.memory_space<vmem>>, vector<1x8xf32>
    %c1_12 = arith.constant 1 : index
    %c0_13 = arith.constant 0 : index
    %11 = vector.load %arg5[%c1_12, %c0_13] : memref<4x8xf32, #tpu.memory_space<vmem>>, vector<1x8xf32>
    %c2_14 = arith.constant 2 : index
    %c0_15 = arith.constant 0 : index
    %12 = vector.load %arg5[%c2_14, %c0_15] : memref<4x8xf32, #tpu.memory_space<vmem>>, vector<1x8xf32>
    %c3_16 = arith.constant 3 : index
    %c0_17 = arith.constant 0 : index
    %13 = vector.load %arg5[%c3_16, %c0_17] : memref<4x8xf32, #tpu.memory_space<vmem>>, vector<1x8xf32>
    %14 = vector.broadcast %9 : vector<8x1xf32> to vector<8x8xf32>
    %15 = vector.broadcast %13 : vector<1x8xf32> to vector<8x8xf32>
    %16 = arith.minimumf %14, %15 : vector<8x8xf32>
    %17 = vector.broadcast %8 : vector<8x1xf32> to vector<8x8xf32>
    %18 = vector.broadcast %12 : vector<1x8xf32> to vector<8x8xf32>
    %19 = arith.maximumf %17, %18 : vector<8x8xf32>
    %20 = arith.subf %16, %19 : vector<8x8xf32>
    %cst_18 = arith.constant 1.000000e+00 : f32
    %21 = vector.broadcast %cst_18 : f32 to vector<8x8xf32>
    %22 = arith.addf %20, %21 : vector<8x8xf32>
    %cst_19 = arith.constant 0.000000e+00 : f32
    %23 = vector.broadcast %cst_19 : f32 to vector<8x8xf32>
    %24 = arith.maximumf %22, %23 : vector<8x8xf32>
    %25 = arith.subf %24, %5 : vector<8x8xf32>
    %26 = tpu.reciprocal %24 {approx = true} : vector<8x8xf32> -> vector<8x8xf32>
    %27 = arith.mulf %25, %26 : vector<8x8xf32>
    %cst_20 = arith.constant 9.99999996E-13 : f32
    %28 = vector.broadcast %cst_20 : f32 to vector<8x8xf32>
    %29 = arith.maximumf %27, %28 : vector<8x8xf32>
    %cst_21 = arith.constant 5.000000e-01 : f32
    %30 = vector.broadcast %cst_21 : f32 to vector<8x1xf32>
    %31 = arith.cmpf ogt, %7, %30 : vector<8x1xf32>
    %cst_22 = arith.constant 5.000000e-01 : f32
    %32 = vector.broadcast %cst_22 : f32 to vector<1x8xf32>
    %33 = arith.cmpf ogt, %11, %32 : vector<1x8xf32>
    %34 = vector.broadcast %31 : vector<8x1xi1> to vector<8x8xi1>
    %35 = vector.broadcast %33 : vector<1x8xi1> to vector<8x8xi1>
    %36 = arith.andi %34, %35 : vector<8x8xi1>
    %37 = vector.broadcast %6 : vector<8x1xf32> to vector<8x8xf32>
    %38 = vector.broadcast %10 : vector<1x8xf32> to vector<8x8xf32>
    %39 = arith.cmpf oeq, %37, %38 : vector<8x8xf32>
    %40 = arith.andi %39, %36 : vector<8x8xi1>
    %41 = vector.broadcast %6 : vector<8x1xf32> to vector<8x8xf32>
    %42 = vector.broadcast %10 : vector<1x8xf32> to vector<8x8xf32>
    %43 = arith.cmpf one, %41, %42 : vector<8x8xf32>
    %44 = arith.andi %43, %36 : vector<8x8xi1>
    %c0_23 = arith.constant 0 : index
    %c0_24 = arith.constant 0 : index
    %45 = vector.load %arg7[%c0_23, %c0_24] : memref<1x8xf32, #tpu.memory_space<vmem>>, vector<1x8xf32>
    %cst_25 = arith.constant 0.000000e+00 : f32
    %cst_26 = arith.constant 1.000000e+30 : f32
    %46 = arith.subf %cst_25, %cst_26 : f32
    %47 = vector.broadcast %46 : f32 to vector<8x8xf32>
    %48 = arith.select %40, %29, %47 : vector<8x8xi1>, vector<8x8xf32>
    %cst_27 = arith.constant dense<0xFF800000> : vector<8xf32>
    %49 = vector.multi_reduction <maximumf>, %48, %cst_27 [0] : vector<8x8xf32> to vector<8xf32>
    %50 = vector.shape_cast %49 : vector<8xf32> to vector<1x8xf32>
    %51 = arith.maximumf %45, %50 : vector<1x8xf32>
    %c0_28 = arith.constant 0 : index
    %c0_29 = arith.constant 0 : index
    %52 = vector.load %arg7[%c0_28, %c0_29] : memref<1x8xf32, #tpu.memory_space<vmem>>, vector<1x8xf32>
    tpu.vector_store %arg7[%c0_28, %c0_29], %51 {strides = array<i32>} : memref<1x8xf32, #tpu.memory_space<vmem>>, vector<1x8xf32>,
    %c0_30 = arith.constant 0 : index
    %c0_31 = arith.constant 0 : index
    %53 = vector.load %arg8[%c0_30, %c0_31] : memref<1x8xf32, #tpu.memory_space<vmem>>, vector<1x8xf32>
    %cst_32 = arith.constant 1.000000e+30 : f32
    %54 = vector.broadcast %cst_32 : f32 to vector<8x8xf32>
    %55 = arith.select %44, %29, %54 : vector<8x8xi1>, vector<8x8xf32>
    %cst_33 = arith.constant dense<0x7F800000> : vector<8xf32>
    %56 = vector.multi_reduction <minimumf>, %55, %cst_33 [0] : vector<8x8xf32> to vector<8xf32>
    %57 = vector.shape_cast %56 : vector<8xf32> to vector<1x8xf32>
    %58 = arith.minimumf %53, %57 : vector<1x8xf32>
    %c0_34 = arith.constant 0 : index
    %c0_35 = arith.constant 0 : index
    %59 = vector.load %arg8[%c0_34, %c0_35] : memref<1x8xf32, #tpu.memory_space<vmem>>, vector<1x8xf32>
    tpu.vector_store %arg8[%c0_34, %c0_35], %58 {strides = array<i32>} : memref<1x8xf32, #tpu.memory_space<vmem>>, vector<1x8xf32>,
    %c0_i32_36 = arith.constant 0 : i32
    %60 = arith.cmpi eq, %arg1, %c0_i32_36 : i32
    %61 = arith.extui %60 : i1 to i32
    %c0_i32_37 = arith.constant 0 : i32
    %62 = arith.cmpi ne, %61, %c0_i32_37 : i32
    scf.if %62 {
      %c0_38 = arith.constant 0 : index
      %c0_39 = arith.constant 0 : index
      %63 = vector.load %arg7[%c0_38, %c0_39] : memref<1x8xf32, #tpu.memory_space<vmem>>, vector<1x8xf32>
      %c0_40 = arith.constant 0 : index
      %c0_41 = arith.constant 0 : index
      %64 = vector.load %arg8[%c0_40, %c0_41] : memref<1x8xf32, #tpu.memory_space<vmem>>, vector<1x8xf32>
      %c0_42 = arith.constant 0 : index
      %c0_43 = arith.constant 0 : index
      %65 = vector.load %arg6[%c0_42, %c0_43] : memref<4x8xf32, #tpu.memory_space<vmem>>, vector<1x8xf32>
      tpu.vector_store %arg6[%c0_42, %c0_43], %63 {strides = array<i32>} : memref<4x8xf32, #tpu.memory_space<vmem>>, vector<1x8xf32>,
      %c1_44 = arith.constant 1 : index
      %c0_45 = arith.constant 0 : index
      %66 = vector.load %arg6[%c1_44, %c0_45] : memref<4x8xf32, #tpu.memory_space<vmem>>, vector<1x8xf32>
      tpu.vector_store %arg6[%c1_44, %c0_45], %64 {strides = array<i32>} : memref<4x8xf32, #tpu.memory_space<vmem>>, vector<1x8xf32>,
      %67 = arith.subf %63, %64 : vector<1x8xf32>
      %cst_46 = arith.constant 0.000000e+00 : f32
      %68 = vector.broadcast %cst_46 : f32 to vector<1x8xf32>
      %69 = arith.addf %67, %68 : vector<1x8xf32>
      %cst_47 = arith.constant 0.000000e+00 : f32
      %70 = vector.broadcast %cst_47 : f32 to vector<1x8xf32>
      %71 = arith.maximumf %69, %70 : vector<1x8xf32>
      %c2_48 = arith.constant 2 : index
      %c0_49 = arith.constant 0 : index
      %72 = vector.load %arg6[%c2_48, %c0_49] : memref<4x8xf32, #tpu.memory_space<vmem>>, vector<1x8xf32>
      tpu.vector_store %arg6[%c2_48, %c0_49], %71 {strides = array<i32>} : memref<4x8xf32, #tpu.memory_space<vmem>>, vector<1x8xf32>,
      %73 = arith.cmpf ogt, %64, %63 : vector<1x8xf32>
      %74 = arith.extui %73 : vector<1x8xi1> to vector<1x8xi32>
      %75 = arith.sitofp %74 : vector<1x8xi32> to vector<1x8xf32>
      %c3_50 = arith.constant 3 : index
      %c0_51 = arith.constant 0 : index
      %76 = vector.load %arg6[%c3_50, %c0_51] : memref<4x8xf32, #tpu.memory_space<vmem>>, vector<1x8xf32>
      tpu.vector_store %arg6[%c3_50, %c0_51], %75 {strides = array<i32>} : memref<4x8xf32, #tpu.memory_space<vmem>>, vector<1x8xf32>,
    } else {
    }
    return
  }
  func.func @transform_0(%arg0: i32, %arg1: i32) -> (i32, i32) {
    %c0_i32 = arith.constant 0 : i32
    %c0_i32_0 = arith.constant 0 : i32
    return %arg1, %c0_i32 : i32, i32
  }
  func.func @transform_1(%arg0: i32, %arg1: i32) -> (i32, i32) {
    %c0_i32 = arith.constant 0 : i32
    %c0_i32_0 = arith.constant 0 : i32
    return %c0_i32, %arg0 : i32, i32
  }
  func.func @transform_2(%arg0: i32, %arg1: i32) -> (i32, i32) {
    %c0_i32 = arith.constant 0 : i32
    %c0_i32_0 = arith.constant 0 : i32
    return %arg1, %c0_i32 : i32, i32
  }
  func.func @transform_3(%arg0: i32, %arg1: i32) -> (i32, i32) {
    %c0_i32 = arith.constant 0 : i32
    %c0_i32_0 = arith.constant 0 : i32
    return %c0_i32, %arg0 : i32, i32
  }
  func.func @transform_4(%arg0: i32, %arg1: i32) -> (i32, i32) {
    %c0_i32 = arith.constant 0 : i32
    %c0_i32_0 = arith.constant 0 : i32
    return %c0_i32, %arg0 : i32, i32
  }
}

</mosaic_0001>

<llo_original>
// kernel: tpu_custom_call.1
$region0: #{tpu_custom_call.1}
  #allocation0 [shape = 'u32[]', space=smem, size = 0x4, offset = 0x4, fixed_abs, tag = 'smem constant byte address 0x4 - core index']
  #allocation1 [shape = 'u32[144,128]{1,0:T(1,128)}', space=vmem, size = 0x12000, scoped, tag = 'internal scratch']
  #allocation2 [shape = 'f32[1,8]{1,0:T(1,128)}', space=vmem, size = 0x200, scoped, tag = 'scratch operand']
  #allocation3 [shape = 'f32[1,8]{1,0:T(1,128)}', space=vmem, size = 0x200, scoped, tag = 'scratch operand']
  %s0 = inlined_call_operand.vmem [shape: bf16[8,128], index: 0, kind: input, shape index: {}]
  %s1 = inlined_call_operand.vmem [shape: bf16[128,8], index: 1, kind: input, shape index: {}]
  %s2 = inlined_call_operand.vmem [shape: f32[8,4], index: 2, kind: input, shape index: {}]
  %s3 = inlined_call_operand.vmem [shape: f32[4,8], index: 3, kind: input, shape index: {}]
  %s4 = inlined_call_operand.hbm [shape: f32[4,8], index: 4, kind: output, shape index: {}]
  %s5 = sld [smem:[#allocation0]]
  $region34: #{tpu_custom_call.1} parent=0
    _
  %s7 = ssub.s32 1, %s5
  %s8 = scalar_select 0, %s7, %s5
  $region1: #{tpu_custom_call.1} parent=0
    #allocation4 [shape = 'u8[2048]{0}', space=vmem, size = 0x800, scoped, tag = 'output window, operand 0, single buffered']
    #allocation5 [shape = 's32[1]{0}', space=sflag, size = 0x4, scoped, tag = 'scoped memory for tpu_custom_call.1']
    %9 = vsyncpa [#allocation5], 0
    // Predicated region
    $region2: #{tpu_custom_call.1} parent=1 // pred_check
      _
    $region3: #{tpu_custom_call.1} parent=1 // pred_check_branch
      %11 = sbr.rel (0) target = $region5
    $region4: #{tpu_custom_call.1} parent=1 // pred_region
      _
    $region5: #{tpu_custom_call.1} parent=1 // pred_fallthru
      _
    // Predicated region
    $region6: #{tpu_custom_call.1} parent=1 // pred_check
      _
    $region7: #{tpu_custom_call.1} parent=1 // pred_check_branch
      %13 = sbr.rel (0) target = $region9
    $region8: #{tpu_custom_call.1} parent=1 // pred_region
      _
    $region9: #{tpu_custom_call.1} parent=1 // pred_fallthru
      _
    // Predicated region
    $region10: #{tpu_custom_call.1} parent=1 // pred_check
      _
    $region11: #{tpu_custom_call.1} parent=1 // pred_check_branch
      %15 = sbr.rel (0) target = $region13
    $region12: #{tpu_custom_call.1} parent=1 // pred_region
      _
    $region13: #{tpu_custom_call.1} parent=1 // pred_fallthru
      _
    // Predicated region
    $region14: #{tpu_custom_call.1} parent=1 // pred_check
      _
    $region15: #{tpu_custom_call.1} parent=1 // pred_check_branch
      %17 = sbr.rel (0) target = $region17
    $region16: #{tpu_custom_call.1} parent=1 // pred_region
      _
    $region17: #{tpu_custom_call.1} parent=1 // pred_fallthru
      _
    %p19 = scmp.eq.s32.totalorder 0, 0
    // Predicated region
    $region18: #{tpu_custom_call.1} parent=1 // pred_check
      %p20 = pneg %p19
    $region19: #{tpu_custom_call.1} parent=1 // pred_check_branch
      %22 = sbr.rel (%p20) target = $region21
    $region20: #{tpu_custom_call.1} parent=1 // pred_region
      %vm23 = vcmask 57344
      %24 = vst.msk [vmem:[#allocation2] sm:$0x1] %vm23, -1e+30
      %25 = vst.msk [vmem:[#allocation3] sm:$0x1] %vm23, 1e+30
    $region21: #{tpu_custom_call.1} parent=1 // pred_fallthru
      _
    %v26 = vld [vmem:[%s0] sm:$0xf]
    %v27 = vld [vmem:[%s1] sm:$0xf]
    %v28 = vld [vmem:[%s1 + $0x4] sm:$0xf]
    %v29 = vld [vmem:[%s1 + $0x8] sm:$0xf]
    %v30 = vld [vmem:[%s1 + $0xc] sm:$0xf]
    %v31 = vld [vmem:[%s1 + $0x10] sm:$0xf]
    %v32 = vld [vmem:[%s1 + $0x14] sm:$0xf]
    %v33 = vld [vmem:[%s1 + $0x18] sm:$0xf]
    %v34 = vld [vmem:[%s1 + $0x1c] sm:$0xf]
    %v35 = vld [vmem:[%s1 + $0x20] sm:$0xf]
    %v36 = vld [vmem:[%s1 + $0x24] sm:$0xf]
    %v37 = vld [vmem:[%s1 + $0x28] sm:$0xf]
    %v38 = vld [vmem:[%s1 + $0x2c] sm:$0xf]
    %v39 = vld [vmem:[%s1 + $0x30] sm:$0xf]
    %v40 = vld [vmem:[%s1 + $0x34] sm:$0xf]
    %v41 = vld [vmem:[%s1 + $0x38] sm:$0xf]
    %v42 = vld [vmem:[%s1 + $0x3c] sm:$0xf]
    %v59 = vunpack.c.l.b16 %v27
    %v60 = vunpack.c.l.b16 %v28
    %v61 = vunpack.c.l.b16 %v29
    %v62 = vunpack.c.l.b16 %v30
    %v63 = vunpack.c.l.b16 %v31
    %v64 = vunpack.c.l.b16 %v32
    %v65 = vunpack.c.l.b16 %v33
    %v66 = vunpack.c.l.b16 %v34
    %v67 = vunpack.c.l.b16 %v35
    %v68 = vunpack.c.l.b16 %v36
    %v69 = vunpack.c.l.b16 %v37
    %v70 = vunpack.c.l.b16 %v38
    %v71 = vunpack.c.l.b16 %v39
    %v72 = vunpack.c.l.b16 %v40
    %v73 = vunpack.c.l.b16 %v41
    %v74 = vunpack.c.l.b16 %v42
    %v75 = vpack.c.b16 %v60, %v59
    %v76 = vpack.c.b16 %v62, %v61
    %v77 = vpack.c.b16 %v64, %v63
    %v78 = vpack.c.b16 %v66, %v65
    %v79 = vpack.c.b16 %v68, %v67
    %v80 = vpack.c.b16 %v70, %v69
    %v81 = vpack.c.b16 %v72, %v71
    %v82 = vpack.c.b16 %v74, %v73
    %91 = vmatprep.subr.bf16.mxu0 0
    %92 = vmatpush1.bf16.msra.mxu0 %v75
    %93 = vmatprep.subr.bf16.mxu0 0
    %94 = vmatpush1.bf16.msra.mxu0 %v76
    %95 = vmatprep.subr.bf16.mxu0 0
    %96 = vmatpush1.bf16.msra.mxu0 %v77
    %97 = vmatprep.subr.bf16.mxu0 0
    %98 = vmatpush1.bf16.msra.mxu0 %v78
    %99 = vmatprep.subr.bf16.mxu0 0
    %100 = vmatpush1.bf16.msra.mxu0 %v79
    %101 = vmatprep.subr.bf16.mxu0 0
    %102 = vmatpush1.bf16.msra.mxu0 %v80
    %103 = vmatprep.subr.bf16.mxu0 0
    %104 = vmatpush1.bf16.msra.mxu0 %v81
    %105 = vmatprep.subr.bf16.mxu0 0
    %106 = vmatpush1.bf16.msra.mxu0 %v82
    %107 = vmatprep.subr.bf16.mxu0 0
    %108 = vmatpush1.bf16.msra.mxu0 0
    %109 = vmatprep.subr.bf16.mxu0 0
    %110 = vmatpush1.bf16.msra.mxu0 0
    %111 = vmatprep.subr.bf16.mxu0 0
    %112 = vmatpush1.bf16.msra.mxu0 0
    %113 = vmatprep.subr.bf16.mxu0 0
    %114 = vmatpush1.bf16.msra.mxu0 0
    %115 = vmatprep.subr.bf16.mxu0 0
    %116 = vmatpush1.bf16.msra.mxu0 0
    %117 = vmatprep.subr.bf16.mxu0 0
    %118 = vmatpush1.bf16.msra.mxu0 0
    %119 = vmatprep.subr.bf16.mxu0 0
    %120 = vmatpush1.bf16.msra.mxu0 0
    %121 = vmatprep.subr.bf16.mxu0 0
    %122 = vmatpush1.bf16.msra.mxu0 0
    %123 = vmatprep.mubr.bf16.mxu0 0
    %124 = vmatmul.mubr.bf16.gmra.mrb[0].mxu0 %v26
    %v125 = vpop.f32.mrb[0].mxu0
    %v126 = vadd.f32 0.0, %v125
    %v127 = vpop.f32.mrb[0].mxu0
    %v128 = vpop.f32.mrb[0].mxu0
    %v129 = vpop.f32.mrb[0].mxu0
    %130 = vdwg.mxu0
    %v131 = vld [vmem:[%s2] sm:$0xff]
    %v132 = vld [vmem:[%s3] sm:$0x1]
    %v133 = vld [vmem:[%s3 + $0x1] sm:$0x1]
    %v134 = vld [vmem:[%s3 + $0x2] sm:$0x1]
    %v135 = vld [vmem:[%s3 + $0x3] sm:$0x1]
    %137 = vset.pattern.permute.xlu0 3
    %138 = vperm.xlu0 %137, %v131
    %v139 = vpop.permute.xlu0 %138
    %v141 = vlaneseq
    %v142 = vshrl.u32 %v141, 7
    %v143 = vsub.s32 0, %v142
    %v144 = vrot.slane %v135, %v143
    %v145 = vmin.f32 %v139, %v144
    %146 = vset.pattern.permute.xlu0 2
    %147 = vperm.xlu0 %146, %v131
    %v148 = vpop.permute.xlu0 %147
    %v150 = vlaneseq
    %v151 = vshrl.u32 %v150, 7
    %v152 = vsub.s32 0, %v151
    %v153 = vrot.slane %v134, %v152
    %v154 = vmax.f32 %v148, %v153
    %v155 = vsub.f32 %v145, %v154
    %v156 = vadd.f32 %v155, 1.0
    %v157 = vmax.f32 %v156, 0.0
    %v158 = vsub.f32 %v157, %v126
    %v159 = vrcp.pop %v157
    %v160 = vmul.f32 %v158, %v159
    %v161 = vmax.f32 %v160, 1e-12
    %vm162 = vcmp.gt.f32.partialorder %v131, 0.5
    %vm163 = vcmp.gt.f32.partialorder %v133, 0.5
    %v164 = vsel %vm162, 1, 0
    %165 = vset.pattern.permute.xlu0 1
    %166 = vperm.xlu0 %165, %v164
    %v167 = vpop.permute.xlu0 %166
    %vm168 = vcmp.eq.s32.totalorder %v167, 1
    %v169 = vsel %vm163, 1, 0
    %v170 = vlaneseq
    %v171 = vshrl.u32 %v170, 7
    %v172 = vsub.s32 0, %v171
    %v173 = vrot.slane %v169, %v172
    %vm174 = vcmp.eq.s32.totalorder %v173, 1
    %vm175 = vmand %vm168, %vm174
    %176 = vset.pattern.permute.xlu0 0
    %177 = vperm.xlu0 %176, %v131
    %v178 = vpop.permute.xlu0 %177
    %v180 = vlaneseq
    %v181 = vshrl.u32 %v180, 7
    %v182 = vsub.s32 0, %v181
    %v183 = vrot.slane %v132, %v182
    %vm184 = vcmp.eq.f32.partialorder %v178, %v183
    %vm185 = vmand %vm184, %vm175
    %vm186 = vcmp.ne.f32.partialorder %v178, %v183
    %vm187 = vmand %vm186, %vm175
    %v188 = vld [vmem:[#allocation2] sm:$0x1]
    %v189 = vsel %vm185, %v161, -1e+30
    %vm190 = vcmask 64512
    %v191 = vsel %vm190, %v189, -inf
    %v192 = vrot.slane %v191, 4
    %v193 = vmax.f32 %v191, %v192
    %v194 = vrot.slane %v193, 2
    %v195 = vmax.f32 %v193, %v194
    %v196 = vrot.slane %v195, 1
    %v197 = vmax.f32 %v195, %v196
    %v198 = vmax.f32 %v188, %v197
    %vm199 = vcmask 57344
    %200 = vst.msk [vmem:[#allocation2] sm:$0x1] %vm199, %v198
    %v201 = vld [vmem:[#allocation3] sm:$0x1]
    %v202 = vsel %vm187, %v161, 1e+30
    %v203 = vsel %vm190, %v202, inf
    %v204 = vrot.slane %v203, 4
    %v205 = vmin.f32 %v203, %v204
    %v206 = vrot.slane %v205, 2
    %v207 = vmin.f32 %v205, %v206
    %v208 = vrot.slane %v207, 1
    %v209 = vmin.f32 %v207, %v208
    %v210 = vmin.f32 %v201, %v209
    %211 = vst.msk [vmem:[#allocation3] sm:$0x1] %vm199, %v210
    // Predicated region
    $region22: #{tpu_custom_call.1} parent=1 // pred_check
      %p212 = pneg %p19
    $region23: #{tpu_custom_call.1} parent=1 // pred_check_branch
      %214 = sbr.rel (%p212) target = $region25
    $region24: #{tpu_custom_call.1} parent=1 // pred_region
      %v215 = vld [vmem:[#allocation2] sm:$0x1]
      %v216 = vld [vmem:[#allocation3] sm:$0x1]
      %217 = vst.msk [vmem:[#allocation4] sm:$0x1] %vm199, %v215
      %218 = vst.msk [vmem:[#allocation4 + $0x1] sm:$0x1] %vm199, %v216
      %v219 = vsub.f32 %v215, %v216
      %v220 = vadd.f32 %v219, 0.0
      %v221 = vmax.f32 %v220, 0.0
      %222 = vst.msk [vmem:[#allocation4 + $0x2] sm:$0x1] %vm199, %v221
      %vm223 = vcmp.gt.f32.partialorder %v216, %v215
      %v224 = vsel %vm223, 1, 0
      %v225 = vcvt.s32.f32 %v224
      %226 = vst.msk [vmem:[#allocation4 + $0x3] sm:$0x1] %vm199, %v225
    $region25: #{tpu_custom_call.1} parent=1 // pred_fallthru
      _
    // Predicated region
    $region26: #{tpu_custom_call.1} parent=1 // pred_check
      _
    $region27: #{tpu_custom_call.1} parent=1 // pred_check_branch
      %228 = sbr.rel (0) target = $region29
    $region28: #{tpu_custom_call.1} parent=1 // pred_region
      %s230 = ssub.s32 64, 64
      %231 = vsyncadd [#allocation5], %s230
      %s233 = sshll.u32 [#allocation4], 4
      %s234 = int_to_ptr.vmem [resolvable:$true] %s233
      %236 = dma.vmem_to_hbm [thread:$0]  %s234, 64, %s4, [#allocation5]
    $region29: #{tpu_custom_call.1} parent=1 // pred_fallthru
      _
    // Predicated region
    $region30: #{tpu_custom_call.1} parent=1 // pred_check
      _
    $region31: #{tpu_custom_call.1} parent=1 // pred_check_branch
      %238 = sbr.rel (0) target = $region33
    $region32: #{tpu_custom_call.1} parent=1 // pred_region
      %239 = dma.done [#allocation5], 64
    $region33: #{tpu_custom_call.1} parent=1 // pred_fallthru
      _
    %240 = vsyncpa [#allocation5], 1

</llo_original>
